<compile_context>
chip_gen: v7x
topology: tpu7x:2x2x1
jax: 0.10.0
libtpu: 0.0.40
codegen_flags: <defaults>
</compile_context>

<pallas_src>
import functools

import jax
import jax.numpy as jnp
from jax.experimental import pallas as pl
from jax.experimental.pallas import tpu as pltpu


def _round_up(x, m):
    return ((x + m - 1) // m) * m


# ----------------------------------------------------------------------------
# Kernel bodies
# ----------------------------------------------------------------------------
def _mlp_row(read_src_scalar, wp_ref, bp_ref, *, input_dim, one_hot_dim,
             n_layers, pad, w1_rows):
    """Computes the full MLP head for one query row; returns a (1, pad) slab.

    read_src_scalar(k) -> f32 scalar src[row, k] (read from SMEM).
    wp_ref: (w1_rows + (L-1)*pad, pad) f32 zero-padded weight slabs, (in,out).
    bp_ref: (L, pad) f32 zero-padded biases.
    """
    # ---- linear1 + ReLU: VPU broadcast-FMA ---------------------------------
    # A 1 x input_dim x pad contraction would waste an MXU pass (1 active row),
    # so do input_dim scalar*vector FMAs on the otherwise-idle VALU instead.
    h = bp_ref[0:1, :]                                        # (1, pad)
    for k in range(input_dim):                                # static unroll
        h = h + read_src_scalar(k) * wp_ref[k:k + 1, :]
    h = jnp.maximum(h, 0.0)
    # Padded lanes of h are relu(0 + 0) = 0.

    off = w1_rows
    if n_layers != 2:
        # ---- linear2 + sigmoid (hidden layer) ------------------------------
        # Padded lanes become sigmoid(0) = 0.5, but the padded rows of the
        # next weight slab are zero, so they contribute nothing downstream.
        w2 = wp_ref[off:off + pad, :]                         # (pad, pad)
        b2 = bp_ref[1:2, :]
        h = jax.nn.sigmoid(
            jnp.dot(h, w2, preferred_element_type=jnp.float32) + b2)
        off += pad
        last = 2
    else:
        last = 1

    # ---- final linear -------------------------------------------------------
    w_last = wp_ref[off:off + pad, :]                         # (pad, pad)
    b_last = bp_ref[last:last + 1, :]
    logits = jnp.dot(h, w_last, preferred_element_type=jnp.float32) + b_last

    # ---- output head --------------------------------------------------------
    # out[:, 0]             = sigmoid(logits[:, 0])
    # out[:, 1:one_hot_dim] = softmax(logits[:, 1:one_hot_dim])
    # lanes >= one_hot_dim are padding (sliced away by the consumer).
    col = jax.lax.broadcasted_iota(jnp.int32, logits.shape, dimension=1)
    is_col0 = col == 0
    in_softmax = jnp.logical_and(col >= 1, col < one_hot_dim)

    sig = jax.nn.sigmoid(logits)                              # EUP work

    masked = jnp.where(in_softmax, logits, jnp.float32(-jnp.inf))
    m = jnp.max(masked, axis=1, keepdims=True)
    e = jnp.exp(masked - m)                                   # masked lanes -> 0
    s = jnp.sum(e, axis=1, keepdims=True)
    # EUP approx reciprocal + one Newton-Raphson refinement (keeps ~1e-7 rel).
    r = pl.reciprocal(s, approx=True)
    r = r * (2.0 - s * r)
    sm = e * r

    # TODO(synk): one_hot_dim == 1 leaves NaN in the (dead) softmax lanes,
    # matching the degenerate PyTorch behaviour; not guarded here.
    return jnp.where(is_col0, sig, sm)


def _mlp_last_kernel(src_ref, wp_ref, bp_ref, out_ref, *, input_dim,
                     one_hot_dim, n_layers, pad, w1_rows):
    """Single-query kernel: computes only the LAST row (module returns out[-1])."""
    row = src_ref.shape[0] - 1                                # static
    out_ref[...] = _mlp_row(
        lambda k: src_ref[row, k], wp_ref, bp_ref,
        input_dim=input_dim, one_hot_dim=one_hot_dim,
        n_layers=n_layers, pad=pad, w1_rows=w1_rows)


def _mlp_batched_kernel(src_ref, wp_ref, bp_ref, out_ref, *, input_dim,
                        one_hot_dim, n_layers, pad, w1_rows):
    """Batched kernel: one query row per grid step; weights stay VMEM-resident."""
    i = pl.program_id(0)
    out_ref[0] = _mlp_row(
        lambda k: src_ref[i, k], wp_ref, bp_ref,
        input_dim=input_dim, one_hot_dim=one_hot_dim,
        n_layers=n_layers, pad=pad, w1_rows=w1_rows)


# ----------------------------------------------------------------------------
# Packing / wrappers
# ----------------------------------------------------------------------------
def pack_params(params, *, input_dim, embedding_dim, one_hot_dim, n_layers):
    """Pack all linears into one lane-dense weight slab and one bias slab.

    Layout (f32, (in, out) orientation):
      rows [0, w1_rows)                     : W1   (w1_rows = round_up(input_dim, 8))
      rows [w1_rows, w1_rows + pad)         : W2
      rows [w1_rows + pad, w1_rows + 2*pad) : W3   (only if n_layers != 2)
    All padding is exactly zero (required invariant, see kernel comments).
    """
    E, O = embedding_dim, one_hot_dim
    pad = _round_up(max(E, O), 128)
    w1_rows = _round_up(input_dim, 8)
    if n_layers == 2:
        dims = [(input_dim, E), (E, O)]
    else:
        dims = [(input_dim, E), (E, E), (E, O)]
    L = len(dims)
    wp = jnp.zeros((w1_rows + (L - 1) * pad, pad), jnp.float32)
    bp = jnp.zeros((L, pad), jnp.float32)
    row = 0
    for i, (fin, fout) in enumerate(dims):
        wp = wp.at[row:row + fin, :fout].set(params[f"w{i + 1}"])
        bp = bp.at[i, :fout].set(params[f"b{i + 1}"].reshape(-1))
        row += w1_rows if i == 0 else pad
    return wp, bp, pad, w1_rows


def _cost_estimate(n_rows, src, wp, bp, pad, input_dim, n_layers):
    n_mm = 1 if n_layers == 2 else 2
    flops = n_rows * (2 * input_dim * pad + n_mm * 2 * pad * pad + 10 * pad)
    transcendentals = n_rows * ((3 if n_layers != 2 else 2) * pad)
    bytes_accessed = (src.size + wp.size + bp.size + n_rows * pad) * 4
    return pl.CostEstimate(flops=flops, transcendentals=transcendentals,
                           bytes_accessed=bytes_accessed)


@functools.partial(jax.jit,
                   static_argnames=("input_dim", "one_hot_dim", "n_layers",
                                    "pad", "w1_rows"))
def mlp_forward(src, wp, bp, *, input_dim, one_hot_dim, n_layers, pad, w1_rows):
    """Fused forward; returns out[-1] with shape (one_hot_dim,).

    The src row selection happens inside the kernel; the final lane slice is
    fused into this jit executable (no extra dispatches)."""
    kernel = functools.partial(
        _mlp_last_kernel, input_dim=input_dim, one_hot_dim=one_hot_dim,
        n_layers=n_layers, pad=pad, w1_rows=w1_rows)
    smem = pl.BlockSpec(memory_space=pltpu.MemorySpace.SMEM)
    vmem = pl.BlockSpec(memory_space=pltpu.MemorySpace.VMEM)
    out = pl.pallas_call(
        kernel,
        out_shape=jax.ShapeDtypeStruct((1, pad), jnp.float32),
        in_specs=[smem, vmem, vmem],
        out_specs=vmem,
        cost_estimate=_cost_estimate(1, src, wp, bp, pad, input_dim, n_layers),
    )(src, wp, bp)
    return out[0, :one_hot_dim]


@functools.partial(jax.jit,
                   static_argnames=("input_dim", "one_hot_dim", "n_layers",
                                    "pad", "w1_rows"))
def mlp_forward_all(src, wp, bp, *, input_dim, one_hot_dim, n_layers, pad,
                    w1_rows):
    """Evaluates the policy head for EVERY row of src (amortized launch/DMA).

    One grid step per query; weight/bias BlockSpecs return a constant block so
    they are DMA'd once and stay VMEM-resident; the query axis is "parallel"
    (sharded across both TensorCores on v7x).  Returns (B, one_hot_dim)."""
    B = src.shape[0]
    kernel = functools.partial(
        _mlp_batched_kernel, input_dim=input_dim, one_hot_dim=one_hot_dim,
        n_layers=n_layers, pad=pad, w1_rows=w1_rows)
    out = pl.pallas_call(
        kernel,
        out_shape=jax.ShapeDtypeStruct((B, 1, pad), jnp.float32),
        grid=(B,),
        in_specs=[
            pl.BlockSpec(memory_space=pltpu.MemorySpace.SMEM),   # src scalars
            pl.BlockSpec(wp.shape, lambda i: (0, 0)),            # resident weights
            pl.BlockSpec(bp.shape, lambda i: (0, 0)),            # resident biases
        ],
        out_specs=pl.BlockSpec((1, 1, pad), lambda i: (i, 0, 0)),
        compiler_params=pltpu.CompilerParams(
            dimension_semantics=("parallel",)),
        cost_estimate=_cost_estimate(B, src, wp, bp, pad, input_dim, n_layers),
    )(src, wp, bp)
    return out[:, 0, :one_hot_dim]


# ----------------------------------------------------------------------------
# Init + pure-JAX reference
# ----------------------------------------------------------------------------
def init_params(key, input_dim, embedding_dim, one_hot_dim, n_layers):
    """Deterministic init mimicking nn.Linear (uniform +-1/sqrt(fan_in)).

    Weights stored as (in_features, out_features)."""
    def linear(k, fan_in, fan_out):
        kw, kb = jax.random.split(k)
        bound = 1.0 / (fan_in ** 0.5)
        w = jax.random.uniform(kw, (fan_in, fan_out), jnp.float32, -bound, bound)
        b = jax.random.uniform(kb, (1, fan_out), jnp.float32, -bound, bound)
        return w, b

    if n_layers == 2:
        dims = [(input_dim, embedding_dim), (embedding_dim, one_hot_dim)]
    else:
        dims = [(input_dim, embedding_dim), (embedding_dim, embedding_dim),
                (embedding_dim, one_hot_dim)]
    keys = jax.random.split(key, len(dims))
    p = {}
    for i, (fi, fo) in enumerate(dims):
        w, b = linear(keys[i], fi, fo)
        p[f"w{i + 1}"] = w
        p[f"b{i + 1}"] = b
    return p


def mlp_reference_all(src, params, *, n_layers):
    """Pure-JAX reference of the PyTorch forward (all rows)."""
    x1 = jnp.maximum(src @ params["w1"] + params["b1"], 0.0)
    if n_layers == 2:
        out = x1 @ params["w2"] + params["b2"]
    else:
        x2 = jax.nn.sigmoid(x1 @ params["w2"] + params["b2"])
        out = x2 @ params["w3"] + params["b3"]
    col0 = jax.nn.sigmoid(out[:, 0:1])
    rest = jax.nn.softmax(out[:, 1:], axis=1)
    return jnp.concatenate([col0, rest], axis=1)


def mlp_reference(src, params, *, n_layers):
    return mlp_reference_all(src, params, n_layers=n_layers)[-1]


# ----------------------------------------------------------------------------
if __name__ == "__main__":
    # Small shapes consistent with the module's usage:
    # 3-D normalized coords + radial distance -> input_dim = 4.
    batch = 8
    input_dim = 4
    embedding_dim = 32
    one_hot_dim = 16

    key = jax.random.PRNGKey(0)
    k_src, k_p3, k_p2 = jax.random.split(key, 3)

    src = jax.random.uniform(k_src, (batch, input_dim), jnp.float32, -1.0, 1.0)

    for n_layers, k in ((3, k_p3), (2, k_p2)):
        params = init_params(k, input_dim, embedding_dim, one_hot_dim, n_layers)
        wp, bp, pad, w1_rows = pack_params(
            params, input_dim=input_dim, embedding_dim=embedding_dim,
            one_hot_dim=one_hot_dim, n_layers=n_layers)

        # Single-query path (exact module semantics: returns out[-1]).
        out = mlp_forward(src, wp, bp, input_dim=input_dim,
                          one_hot_dim=one_hot_dim, n_layers=n_layers,
                          pad=pad, w1_rows=w1_rows)
        out = jax.block_until_ready(out)
        ref = mlp_reference(src, params, n_layers=n_layers)
        assert out.shape == (one_hot_dim,)
        assert jnp.allclose(out, ref, atol=1e-5, rtol=1e-5), (n_layers, out, ref)

        # Batched path (grid over query rows, weight-resident BlockSpecs).
        out_all = mlp_forward_all(src, wp, bp, input_dim=input_dim,
                                  one_hot_dim=one_hot_dim, n_layers=n_layers,
                                  pad=pad, w1_rows=w1_rows)
        out_all = jax.block_until_ready(out_all)
        ref_all = mlp_reference_all(src, params, n_layers=n_layers)
        assert out_all.shape == (batch, one_hot_dim)
        assert jnp.allclose(out_all, ref_all, atol=1e-5, rtol=1e-5), n_layers

    print("KERNEL_OK")
</pallas_src>

<mosaic_0001>
module attributes {stable_mosaic.version = 11 : i64} {
  func.func @_mlp_last_kernel(%arg0: memref<8x4xf32, #tpu.memory_space<smem>>, %arg1: memref<264x128xf32, #tpu.memory_space<vmem>>, %arg2: memref<3x128xf32, #tpu.memory_space<vmem>>, %arg3: memref<1x128xf32, #tpu.memory_space<vmem>>) attributes {dimension_semantics = [], scalar_prefetch = 0 : i64, scratch_operands = 0 : i64, tpu.core_type = #tpu.core_type<tc>} {
    %c0 = arith.constant 0 : index
    %c0_0 = arith.constant 0 : index
    %0 = vector.load %arg2[%c0, %c0_0] : memref<3x128xf32, #tpu.memory_space<vmem>>, vector<1x128xf32>
    %c7 = arith.constant 7 : index
    %c0_1 = arith.constant 0 : index
    %1 = memref.load %arg0[%c7, %c0_1] : memref<8x4xf32, #tpu.memory_space<smem>>
    %c0_2 = arith.constant 0 : index
    %c0_3 = arith.constant 0 : index
    %2 = vector.load %arg1[%c0_2, %c0_3] : memref<264x128xf32, #tpu.memory_space<vmem>>, vector<1x128xf32>
    %3 = vector.broadcast %1 : f32 to vector<1x128xf32>
    %4 = arith.mulf %3, %2 : vector<1x128xf32>
    %5 = arith.addf %0, %4 : vector<1x128xf32>
    %c7_4 = arith.constant 7 : index
    %c1 = arith.constant 1 : index
    %6 = memref.load %arg0[%c7_4, %c1] : memref<8x4xf32, #tpu.memory_space<smem>>
    %c1_5 = arith.constant 1 : index
    %c0_6 = arith.constant 0 : index
    %7 = vector.load %arg1[%c1_5, %c0_6] : memref<264x128xf32, #tpu.memory_space<vmem>>, vector<1x128xf32>
    %8 = vector.broadcast %6 : f32 to vector<1x128xf32>
    %9 = arith.mulf %8, %7 : vector<1x128xf32>
    %10 = arith.addf %5, %9 : vector<1x128xf32>
    %c7_7 = arith.constant 7 : index
    %c2 = arith.constant 2 : index
    %11 = memref.load %arg0[%c7_7, %c2] : memref<8x4xf32, #tpu.memory_space<smem>>
    %c2_8 = arith.constant 2 : index
    %c0_9 = arith.constant 0 : index
    %12 = vector.load %arg1[%c2_8, %c0_9] : memref<264x128xf32, #tpu.memory_space<vmem>>, vector<1x128xf32>
    %13 = vector.broadcast %11 : f32 to vector<1x128xf32>
    %14 = arith.mulf %13, %12 : vector<1x128xf32>
    %15 = arith.addf %10, %14 : vector<1x128xf32>
    %c7_10 = arith.constant 7 : index
    %c3 = arith.constant 3 : index
    %16 = memref.load %arg0[%c7_10, %c3] : memref<8x4xf32, #tpu.memory_space<smem>>
    %c3_11 = arith.constant 3 : index
    %c0_12 = arith.constant 0 : index
    %17 = vector.load %arg1[%c3_11, %c0_12] : memref<264x128xf32, #tpu.memory_space<vmem>>, vector<1x128xf32>
    %18 = vector.broadcast %16 : f32 to vector<1x128xf32>
    %19 = arith.mulf %18, %17 : vector<1x128xf32>
    %20 = arith.addf %15, %19 : vector<1x128xf32>
    %cst = arith.constant 0.000000e+00 : f32
    %21 = vector.broadcast %cst : f32 to vector<1x128xf32>
    %22 = arith.maximumf %20, %21 : vector<1x128xf32>
    %c8 = arith.constant 8 : index
    %c0_13 = arith.constant 0 : index
    %23 = vector.load %arg1[%c8, %c0_13] : memref<264x128xf32, #tpu.memory_space<vmem>>, vector<128x128xf32>
    %c1_14 = arith.constant 1 : index
    %c0_15 = arith.constant 0 : index
    %24 = vector.load %arg2[%c1_14, %c0_15] : memref<3x128xf32, #tpu.memory_space<vmem>>, vector<1x128xf32>
    %cst_16 = arith.constant dense<0.000000e+00> : vector<1x128xf32>
    %25 = tpu.matmul %22, %23, %cst_16 {dimension_numbers = #tpu.dot_dimension_numbers<[1], [0], [0], [1], [0, 0, 1, 1], [], []>} : vector<1x128xf32>, vector<128x128xf32>, vector<1x128xf32> -> vector<1x128xf32>
    %26 = arith.addf %25, %24 : vector<1x128xf32>
    %27 = arith.negf %26 : vector<1x128xf32>
    %28 = math.exp %27 : vector<1x128xf32>
    %cst_17 = arith.constant 1.000000e+00 : f32
    %29 = vector.broadcast %cst_17 : f32 to vector<1x128xf32>
    %30 = arith.addf %29, %28 : vector<1x128xf32>
    %31 = arith.divf %29, %30 : vector<1x128xf32>
    %c136 = arith.constant 136 : index
    %c0_18 = arith.constant 0 : index
    %32 = vector.load %arg1[%c136, %c0_18] : memref<264x128xf32, #tpu.memory_space<vmem>>, vector<128x128xf32>
    %c2_19 = arith.constant 2 : index
    %c0_20 = arith.constant 0 : index
    %33 = vector.load %arg2[%c2_19, %c0_20] : memref<3x128xf32, #tpu.memory_space<vmem>>, vector<1x128xf32>
    %cst_21 = arith.constant dense<0.000000e+00> : vector<1x128xf32>
    %34 = tpu.matmul %31, %32, %cst_21 {dimension_numbers = #tpu.dot_dimension_numbers<[1], [0], [0], [1], [0, 0, 1, 1], [], []>} : vector<1x128xf32>, vector<128x128xf32>, vector<1x128xf32> -> vector<1x128xf32>
    %35 = arith.addf %34, %33 : vector<1x128xf32>
    %36 = tpu.iota {dimensions = array<i32: 1>} : vector<1x128xi32>
    %c0_i32 = arith.constant 0 : i32
    %37 = vector.broadcast %c0_i32 : i32 to vector<1x128xi32>
    %38 = arith.cmpi eq, %36, %37 : vector<1x128xi32>
    %c1_i32 = arith.constant 1 : i32
    %39 = vector.broadcast %c1_i32 : i32 to vector<1x128xi32>
    %40 = arith.cmpi sge, %36, %39 : vector<1x128xi32>
    %c16_i32 = arith.constant 16 : i32
    %41 = vector.broadcast %c16_i32 : i32 to vector<1x128xi32>
    %42 = arith.cmpi slt, %36, %41 : vector<1x128xi32>
    %43 = arith.andi %40, %42 : vector<1x128xi1>
    %44 = arith.negf %35 : vector<1x128xf32>
    %45 = math.exp %44 : vector<1x128xf32>
    %cst_22 = arith.constant 1.000000e+00 : f32
    %46 = vector.broadcast %cst_22 : f32 to vector<1x128xf32>
    %47 = arith.addf %46, %45 : vector<1x128xf32>
    %48 = arith.divf %46, %47 : vector<1x128xf32>
    %cst_23 = arith.constant 0xFF800000 : f32
    %49 = vector.broadcast %cst_23 : f32 to vector<1x128xf32>
    %50 = arith.select %43, %35, %49 : vector<1x128xi1>, vector<1x128xf32>
    %cst_24 = arith.constant dense<0xFF800000> : vector<1xf32>
    %51 = vector.multi_reduction <maximumf>, %50, %cst_24 [1] : vector<1x128xf32> to vector<1xf32>
    %52 = vector.shape_cast %51 : vector<1xf32> to vector<1x1xf32>
    %53 = vector.broadcast %52 : vector<1x1xf32> to vector<1x128xf32>
    %54 = arith.subf %50, %53 : vector<1x128xf32>
    %55 = math.exp %54 : vector<1x128xf32>
    %cst_25 = arith.constant dense<0.000000e+00> : vector<1xf32>
    %56 = vector.multi_reduction <add>, %55, %cst_25 [1] : vector<1x128xf32> to vector<1xf32>
    %57 = vector.shape_cast %56 : vector<1xf32> to vector<1x1xf32>
    %58 = tpu.reciprocal %57 {approx = true} : vector<1x1xf32> -> vector<1x1xf32>
    %59 = arith.mulf %57, %58 : vector<1x1xf32>
    %cst_26 = arith.constant 2.000000e+00 : f32
    %60 = vector.broadcast %cst_26 : f32 to vector<1x1xf32>
    %61 = arith.subf %60, %59 : vector<1x1xf32>
    %62 = arith.mulf %58, %61 : vector<1x1xf32>
    %63 = vector.broadcast %62 : vector<1x1xf32> to vector<1x128xf32>
    %64 = arith.mulf %55, %63 : vector<1x128xf32>
    %65 = arith.select %38, %48, %64 : vector<1x128xi1>, vector<1x128xf32>
    %c0_27 = arith.constant 0 : index
    %c0_28 = arith.constant 0 : index
    %66 = vector.load %arg3[%c0_27, %c0_28] : memref<1x128xf32, #tpu.memory_space<vmem>>, vector<1x128xf32>
    tpu.vector_store %arg3[%c0_27, %c0_28], %65 {strides = array<i32>} : memref<1x128xf32, #tpu.memory_space<vmem>>, vector<1x128xf32>,
    return
  }
}

</mosaic_0001>

<llo_original>
// kernel: mlp_forward.1
$region0: #{mlp_forward.1}
  #allocation0 [shape = 'u32[]', space=smem, size = 0x4, offset = 0x4, fixed_abs, tag = 'smem constant byte address 0x4 - core index']
  #allocation1 [shape = 'u32[144,128]{1,0:T(1,128)}', space=vmem, size = 0x12000, scoped, tag = 'internal scratch']
  %s0 = inlined_call_operand.vmem [shape: f32[8,4], index: 0, kind: input, shape index: {}]
  %s1 = inlined_call_operand.hbm [shape: f32[264,128], index: 1, kind: input, shape index: {}]
  %s2 = inlined_call_operand.vmem [shape: f32[3,128], index: 2, kind: input, shape index: {}]
  %s3 = inlined_call_operand.vmem [shape: f32[1,128], index: 3, kind: output, shape index: {}]
  %s4 = sld [smem:[#allocation0]]
  $region30: #{mlp_forward.1} parent=0
    _
  %s6 = ssub.s32 1, %s4
  %s7 = scalar_select 0, %s6, %s4
  $region1: #{mlp_forward.1} parent=0
    #allocation2 [shape = 'u8[4096]{0}', space=smem, size = 0x1000, scoped, tag = 'input window, operand 0, single buffered']
    #allocation3 [shape = 's32[1]{0}', space=sflag, size = 0x4, scoped, tag = 'scoped memory for mlp_forward.1']
    #allocation4 [shape = 's32[1]{0}', space=sflag, size = 0x4, scoped, tag = 'scoped memory for mlp_forward.1']
    #allocation5 [shape = 'u8[135168]{0}', space=vmem, size = 0x21000, scoped, tag = 'input window, operand 1, single buffered']
    %8 = vsyncpa [#allocation4], 0
    %9 = vsyncpa [#allocation3], 0
    // Predicated region
    $region2: #{mlp_forward.1} parent=1 // pred_check
      _
    $region3: #{mlp_forward.1} parent=1 // pred_check_branch
      %11 = sbr.rel (0) target = $region5
    $region4: #{mlp_forward.1} parent=1 // pred_region
      %s13 = ssub.s32 128, 128
      %14 = vsyncadd [#allocation4], %s13
      %s16 = sshll.u32 %s0, 4
      %s17 = int_to_ptr.vmem [resolvable:$true] %s16
      %19 = dma.vmem_to_smem %s17, 128, [#allocation2], [#allocation4]
    $region5: #{mlp_forward.1} parent=1 // pred_fallthru
      _
    // Predicated region
    $region6: #{mlp_forward.1} parent=1 // pred_check
      _
    $region7: #{mlp_forward.1} parent=1 // pred_check_branch
      %21 = sbr.rel (0) target = $region9
    $region8: #{mlp_forward.1} parent=1 // pred_region
      %s23 = ssub.s32 4224, 4224
      %24 = vsyncadd [#allocation3], %s23
      %s25 = sshll.u32 [#allocation5], 4
      %s26 = int_to_ptr.vmem [resolvable:$true] %s25
      %31 = dma.hbm_to_vmem [thread:$0]  %s1, 4224, %s26, [#allocation3], 128, 128, 8
    $region9: #{mlp_forward.1} parent=1 // pred_fallthru
      _
    // Predicated region
    $region10: #{mlp_forward.1} parent=1 // pred_check
      _
    $region11: #{mlp_forward.1} parent=1 // pred_check_branch
      %33 = sbr.rel (0) target = $region13
    $region12: #{mlp_forward.1} parent=1 // pred_region
      _
    $region13: #{mlp_forward.1} parent=1 // pred_fallthru
      _
    // Predicated region
    $region14: #{mlp_forward.1} parent=1 // pred_check
      _
    $region15: #{mlp_forward.1} parent=1 // pred_check_branch
      %35 = sbr.rel (0) target = $region17
    $region16: #{mlp_forward.1} parent=1 // pred_region
      %36 = dma.done [#allocation4], 128
    $region17: #{mlp_forward.1} parent=1 // pred_fallthru
      _
    // Predicated region
    $region18: #{mlp_forward.1} parent=1 // pred_check
      _
    $region19: #{mlp_forward.1} parent=1 // pred_check_branch
      %38 = sbr.rel (0) target = $region21
    $region20: #{mlp_forward.1} parent=1 // pred_region
      %39 = dma.done [#allocation3], 4224
    $region21: #{mlp_forward.1} parent=1 // pred_fallthru
      _
    %40 = sfence
    %v41 = vld [vmem:[%s2] sm:$0x1]
    %s42 = sld [smem:[#allocation2 + $0x380]]
    %v43 = vld [vmem:[#allocation5] sm:$0x1]
    %v44 = vstv %s42
    %v45 = vmul.f32 %v44, %v43
    %v46 = vadd.f32 %v41, %v45
    %s47 = sld [smem:[#allocation2 + $0x381]]
    %v48 = vld [vmem:[#allocation5 + $0x1] sm:$0x1]
    %v49 = vstv %s47
    %v50 = vmul.f32 %v49, %v48
    %v51 = vadd.f32 %v46, %v50
    %s52 = sld [smem:[#allocation2 + $0x382]]
    %v53 = vld [vmem:[#allocation5 + $0x2] sm:$0x1]
    %v54 = vstv %s52
    %v55 = vmul.f32 %v54, %v53
    %v56 = vadd.f32 %v51, %v55
    %s57 = sld [smem:[#allocation2 + $0x383]]
    %v58 = vld [vmem:[#allocation5 + $0x3] sm:$0x1]
    %v59 = vstv %s57
    %v60 = vmul.f32 %v59, %v58
    %v61 = vadd.f32 %v56, %v60
    %v62 = vmax.f32 %v61, 0.0
    %v63 = vld [vmem:[#allocation5 + $0x8] sm:$0xff]
    %v64 = vld [vmem:[#allocation5 + $0x10] sm:$0xff]
    %v65 = vld [vmem:[#allocation5 + $0x18] sm:$0xff]
    %v66 = vld [vmem:[#allocation5 + $0x20] sm:$0xff]
    %v67 = vld [vmem:[#allocation5 + $0x28] sm:$0xff]
    %v68 = vld [vmem:[#allocation5 + $0x30] sm:$0xff]
    %v69 = vld [vmem:[#allocation5 + $0x38] sm:$0xff]
    %v70 = vld [vmem:[#allocation5 + $0x40] sm:$0xff]
    %v71 = vld [vmem:[#allocation5 + $0x48] sm:$0xff]
    %v72 = vld [vmem:[#allocation5 + $0x50] sm:$0xff]
    %v73 = vld [vmem:[#allocation5 + $0x58] sm:$0xff]
    %v74 = vld [vmem:[#allocation5 + $0x60] sm:$0xff]
    %v75 = vld [vmem:[#allocation5 + $0x68] sm:$0xff]
    %v76 = vld [vmem:[#allocation5 + $0x70] sm:$0xff]
    %v77 = vld [vmem:[#allocation5 + $0x78] sm:$0xff]
    %v78 = vld [vmem:[#allocation5 + $0x80] sm:$0xff]
    %v79 = vld [vmem:[%s2 + $0x1] sm:$0x1]
    %80 = vmatprep.subr.mxu0 0.0
    %81 = vmatpush1.msra.mxu0 %v63
    %82 = vmatprep.subr.mxu0 0.0
    %83 = vmatpush1.msra.mxu0 %v64
    %84 = vmatprep.subr.mxu0 0.0
    %85 = vmatpush1.msra.mxu0 %v65
    %86 = vmatprep.subr.mxu0 0.0
    %87 = vmatpush1.msra.mxu0 %v66
    %88 = vmatprep.subr.mxu0 0.0
    %89 = vmatpush1.msra.mxu0 %v67
    %90 = vmatprep.subr.mxu0 0.0
    %91 = vmatpush1.msra.mxu0 %v68
    %92 = vmatprep.subr.mxu0 0.0
    %93 = vmatpush1.msra.mxu0 %v69
    %94 = vmatprep.subr.mxu0 0.0
    %95 = vmatpush1.msra.mxu0 %v70
    %96 = vmatprep.subr.mxu0 0.0
    %97 = vmatpush1.msra.mxu0 %v71
    %98 = vmatprep.subr.mxu0 0.0
    %99 = vmatpush1.msra.mxu0 %v72
    %100 = vmatprep.subr.mxu0 0.0
    %101 = vmatpush1.msra.mxu0 %v73
    %102 = vmatprep.subr.mxu0 0.0
    %103 = vmatpush1.msra.mxu0 %v74
    %104 = vmatprep.subr.mxu0 0.0
    %105 = vmatpush1.msra.mxu0 %v75
    %106 = vmatprep.subr.mxu0 0.0
    %107 = vmatpush1.msra.mxu0 %v76
    %108 = vmatprep.subr.mxu0 0.0
    %109 = vmatpush1.msra.mxu0 %v77
    %110 = vmatprep.subr.mxu0 0.0
    %111 = vmatpush1.msra.mxu0 %v78
    %112 = vmatprep.subr.mxu0 0.0
    %113 = vmatpush1.msra.mxu0 0.0
    %114 = vmatprep.subr.mxu0 0.0
    %115 = vmatpush1.msra.mxu0 0.0
    %116 = vmatprep.subr.mxu0 0.0
    %117 = vmatpush1.msra.mxu0 0.0
    %118 = vmatprep.subr.mxu0 0.0
    %119 = vmatpush1.msra.mxu0 0.0
    %120 = vmatprep.subr.mxu0 0.0
    %121 = vmatpush1.msra.mxu0 0.0
    %122 = vmatprep.subr.mxu0 0.0
    %123 = vmatpush1.msra.mxu0 0.0
    %124 = vmatprep.subr.mxu0 0.0
    %125 = vmatpush1.msra.mxu0 0.0
    %126 = vmatprep.subr.mxu0 0.0
    %127 = vmatpush1.msra.mxu0 0.0
    %128 = vmatprep.subr.mxu0 0.0
    %129 = vmatpush1.msra.mxu0 0.0
    %130 = vmatprep.subr.mxu0 0.0
    %131 = vmatpush1.msra.mxu0 0.0
    %132 = vmatprep.subr.mxu0 0.0
    %133 = vmatpush1.msra.mxu0 0.0
    %134 = vmatprep.subr.mxu0 0.0
    %135 = vmatpush1.msra.mxu0 0.0
    %136 = vmatprep.subr.mxu0 0.0
    %137 = vmatpush1.msra.mxu0 0.0
    %138 = vmatprep.subr.mxu0 0.0
    %139 = vmatpush1.msra.mxu0 0.0
    %140 = vmatprep.subr.mxu0 0.0
    %141 = vmatpush1.msra.mxu0 0.0
    %142 = vmatprep.subr.mxu0 0.0
    %143 = vmatpush1.msra.mxu0 0.0
    %144 = vmatprep.mubr.f32.mxu0 0.0
    %145 = vmatmul.mubr.f32.gmra.mrb[0].mxu0 %v62
    %v146 = vpop.f32.mrb[0].mxu0
    %v147 = vadd.f32 %v79, %v146
    %v148 = vpop.f32.mrb[0].mxu0
    %149 = vdwg.mxu0
    %v150 = vxor.u32 %v147, 2147483648
    %v151 = vmul.f32 %v150, 1.442695
    %v152 = vpow.pop %v151
    %v153 = vadd.f32 %v152, 1.0
    %v154 = vrcp.pop %v153
    %v155 = vmul.f32 1.0, %v154
    %v156 = vld [vmem:[#allocation5 + $0x88] sm:$0xff]
    %v157 = vld [vmem:[#allocation5 + $0x90] sm:$0xff]
    %v158 = vld [vmem:[#allocation5 + $0x98] sm:$0xff]
    %v159 = vld [vmem:[#allocation5 + $0xa0] sm:$0xff]
    %v160 = vld [vmem:[#allocation5 + $0xa8] sm:$0xff]
    %v161 = vld [vmem:[#allocation5 + $0xb0] sm:$0xff]
    %v162 = vld [vmem:[#allocation5 + $0xb8] sm:$0xff]
    %v163 = vld [vmem:[#allocation5 + $0xc0] sm:$0xff]
    %v164 = vld [vmem:[#allocation5 + $0xc8] sm:$0xff]
    %v165 = vld [vmem:[#allocation5 + $0xd0] sm:$0xff]
    %v166 = vld [vmem:[#allocation5 + $0xd8] sm:$0xff]
    %v167 = vld [vmem:[#allocation5 + $0xe0] sm:$0xff]
    %v168 = vld [vmem:[#allocation5 + $0xe8] sm:$0xff]
    %v169 = vld [vmem:[#allocation5 + $0xf0] sm:$0xff]
    %v170 = vld [vmem:[#allocation5 + $0xf8] sm:$0xff]
    %v171 = vld [vmem:[#allocation5 + $0x100] sm:$0xff]
    %v172 = vld [vmem:[%s2 + $0x2] sm:$0x1]
    %173 = vmatprep.subr.mxu0 0.0
    %174 = vmatpush1.msra.mxu0 %v156
    %175 = vmatprep.subr.mxu0 0.0
    %176 = vmatpush1.msra.mxu0 %v157
    %177 = vmatprep.subr.mxu0 0.0
    %178 = vmatpush1.msra.mxu0 %v158
    %179 = vmatprep.subr.mxu0 0.0
    %180 = vmatpush1.msra.mxu0 %v159
    %181 = vmatprep.subr.mxu0 0.0
    %182 = vmatpush1.msra.mxu0 %v160
    %183 = vmatprep.subr.mxu0 0.0
    %184 = vmatpush1.msra.mxu0 %v161
    %185 = vmatprep.subr.mxu0 0.0
    %186 = vmatpush1.msra.mxu0 %v162
    %187 = vmatprep.subr.mxu0 0.0
    %188 = vmatpush1.msra.mxu0 %v163
    %189 = vmatprep.subr.mxu0 0.0
    %190 = vmatpush1.msra.mxu0 %v164
    %191 = vmatprep.subr.mxu0 0.0
    %192 = vmatpush1.msra.mxu0 %v165
    %193 = vmatprep.subr.mxu0 0.0
    %194 = vmatpush1.msra.mxu0 %v166
    %195 = vmatprep.subr.mxu0 0.0
    %196 = vmatpush1.msra.mxu0 %v167
    %197 = vmatprep.subr.mxu0 0.0
    %198 = vmatpush1.msra.mxu0 %v168
    %199 = vmatprep.subr.mxu0 0.0
    %200 = vmatpush1.msra.mxu0 %v169
    %201 = vmatprep.subr.mxu0 0.0
    %202 = vmatpush1.msra.mxu0 %v170
    %203 = vmatprep.subr.mxu0 0.0
    %204 = vmatpush1.msra.mxu0 %v171
    %205 = vmatprep.subr.mxu0 0.0
    %206 = vmatpush1.msra.mxu0 0.0
    %207 = vmatprep.subr.mxu0 0.0
    %208 = vmatpush1.msra.mxu0 0.0
    %209 = vmatprep.subr.mxu0 0.0
    %210 = vmatpush1.msra.mxu0 0.0
    %211 = vmatprep.subr.mxu0 0.0
    %212 = vmatpush1.msra.mxu0 0.0
    %213 = vmatprep.subr.mxu0 0.0
    %214 = vmatpush1.msra.mxu0 0.0
    %215 = vmatprep.subr.mxu0 0.0
    %216 = vmatpush1.msra.mxu0 0.0
    %217 = vmatprep.subr.mxu0 0.0
    %218 = vmatpush1.msra.mxu0 0.0
    %219 = vmatprep.subr.mxu0 0.0
    %220 = vmatpush1.msra.mxu0 0.0
    %221 = vmatprep.subr.mxu0 0.0
    %222 = vmatpush1.msra.mxu0 0.0
    %223 = vmatprep.subr.mxu0 0.0
    %224 = vmatpush1.msra.mxu0 0.0
    %225 = vmatprep.subr.mxu0 0.0
    %226 = vmatpush1.msra.mxu0 0.0
    %227 = vmatprep.subr.mxu0 0.0
    %228 = vmatpush1.msra.mxu0 0.0
    %229 = vmatprep.subr.mxu0 0.0
    %230 = vmatpush1.msra.mxu0 0.0
    %231 = vmatprep.subr.mxu0 0.0
    %232 = vmatpush1.msra.mxu0 0.0
    %233 = vmatprep.subr.mxu0 0.0
    %234 = vmatpush1.msra.mxu0 0.0
    %235 = vmatprep.subr.mxu0 0.0
    %236 = vmatpush1.msra.mxu0 0.0
    %237 = vmatprep.mubr.f32.mxu0 0.0
    %238 = vmatmul.mubr.f32.gmra.mrb[0].mxu0 %v155
    %v239 = vpop.f32.mrb[0].mxu0
    %v240 = vadd.f32 %v172, %v239
    %v241 = vpop.f32.mrb[0].mxu0
    %242 = vdwg.mxu0
    %v243 = vlaneseq
    %v244 = vand.u32 %v243, 127
    %vm245 = vcmp.eq.s32.totalorder %v244, 0
    %vm246 = vcmp.ge.s32.totalorder %v244, 1
    %vm247 = vcmp.lt.s32.totalorder %v244, 16
    %vm248 = vmand %vm246, %vm247
    %v249 = vxor.u32 %v240, 2147483648
    %v250 = vmul.f32 %v249, 1.442695
    %v251 = vpow.pop %v250
    %v252 = vadd.f32 %v251, 1.0
    %v253 = vrcp.pop %v252
    %v254 = vmul.f32 1.0, %v253
    %v255 = vsel %vm248, %v240, -inf
    %vm256 = vcmask 1040384
    %v257 = vsel %vm256, %v255, -inf
    %258 = vmax.xlane.f32.xlu0 %v257
    %v259 = vpop.xlane.xlu0 %258
    %v260 = vsub.f32 %v255, %v259
    %v261 = vmul.f32 %v260, 1.442695
    %v262 = vpow.pop %v261
    %v263 = vsel %vm256, %v262, 0.0
    %264 = vadd.xlane.f32.xlu0 %v263
    %v265 = vpop.xlane.xlu0 %264
    %v266 = vrcp.pop %v265
    %v267 = vmul.f32 %v265, %v266
    %v268 = vsub.f32 2.0, %v267
    %v269 = vmul.f32 %v266, %v268
    %v270 = vmul.f32 %v262, %v269
    %v271 = vsel %vm245, %v254, %v270
    %272 = vst [vmem:[%s3] sm:$0x1] %v271
    // Predicated region
    $region22: #{mlp_forward.1} parent=1 // pred_check
      _
    $region23: #{mlp_forward.1} parent=1 // pred_check_branch
      %274 = sbr.rel (0) target = $region25
    $region24: #{mlp_forward.1} parent=1 // pred_region
      _
    $region25: #{mlp_forward.1} parent=1 // pred_fallthru
      _
    // Predicated region
    $region26: #{mlp_forward.1} parent=1 // pred_check
      _
    $region27: #{mlp_forward.1} parent=1 // pred_check_branch
      %276 = sbr.rel (0) target = $region29
    $region28: #{mlp_forward.1} parent=1 // pred_region
      _
    $region29: #{mlp_forward.1} parent=1 // pred_fallthru
      _
    %277 = vsyncpa [#allocation3], 1
    %278 = vsyncpa [#allocation4], 1

</llo_original>
